<compile_context>
chip_gen: v7x
topology: tpu7x:2x2x1
jax: 0.10.0
libtpu: 0.0.40
codegen_flags: <defaults>
</compile_context>

<pallas_src>
import numpy as np
import jax
import jax.numpy as jnp
from jax.experimental import pallas as pl
from jax.experimental.pallas import tpu as pltpu

# ----------------- config consistent with DiffSysId_base.__init__ -----------------
TS_DIM = 4            # K  (ts_dim)
EMB_TIME = 16         # config['model']['timeemb']
EMB_FEAT = 16         # config['model']['featureemb']
EMB_TOTAL = EMB_TIME + EMB_FEAT
T_HALF = EMB_TIME // 2
PARAM_DIM = 8         # config['model']['param_dim']
NUM_STEPS = 10        # config['diffusion']['num_steps']
BETA_START = 1e-4
BETA_END = 0.5
B = 2                 # batch
L = 8                 # sequence length
HIDDEN = 128          # stand-in noise_predictor hidden width (lane aligned)
DIFF_EMB = 16         # stand-in diffusion-step embedding dim

THL = T_HALF * L          # 64 : flattened (T/2, L) time-embedding size
OBS_FLAT = TS_DIM * L     # 32 : flattened observed_data per sample

# ---- lane offsets of the packed f32 conditioning input `cond` (B, 128) ----
C_PAR = 0                              # parameters            [0, 8)
C_TEMB = C_PAR + PARAM_DIM             # diffusion-step emb    [8, 24)
C_OBS = C_TEMB + DIFF_EMB              # observed_data flat    [24, 56)
C_FEAT = C_OBS + OBS_FLAT              # feature-embed pool    [56, 72)
C_NOISE = C_FEAT + EMB_FEAT            # noise                 [72, 80)
C_SA = C_NOISE + PARAM_DIM             # sqrt(alpha_t)         [80, 81)
C_SOMA = C_SA + 1                      # sqrt(1 - alpha_t)     [81, 82)
COND_W = 128

# ---- lane offsets of the packed first-layer activation (B, 256) ----
A_SIN = C_NOISE                        # sin slab              [72, 136)
A_COS = A_SIN + THL                    # cos slab              [136, 200)
ACT_W = 256

W1_ROWS = ACT_W                        # packed W1: (256, 128)
WSLAB_ROWS = W1_ROWS + HIDDEN          # + W2 padded: (384, 128)


# ----------------------------------- fused kernel ---------------------------------------
def fused_kernel(cond_ref, ang_ref, bias_ref, w_ref, out_ref, act_ref):
    # cond: (B,128) f32   ang: (B,128) f32   bias: (2,128) f32   w: (384,128) bf16
    # out:  (B,256) f32 = [sin(64) | cos(64) | loss broadcast(128)]
    # act:  (B,256) f32 VMEM scratch (packed first-layer activation)
    Bq = cond_ref.shape[0]
    cond = cond_ref[...]
    ang = ang_ref[...]

    # ---- time embedding: single lane-dense sin / cos over (B, T/2 * L) ----
    angle = ang[:, 0:THL] * ang[:, THL:2 * THL]
    s = jnp.sin(angle)
    c = jnp.cos(angle)

    # compact side-info slab; K-replication / interleave / feature slab done in wrapper
    out_ref[:, 0:THL] = s
    out_ref[:, THL:2 * THL] = c

    # ---- diffusion loss: noisy params (sqrt terms precomputed outside the kernel) ----
    noisy = (cond[:, C_SA:C_SA + 1] * cond[:, C_PAR:C_PAR + PARAM_DIM]
             + cond[:, C_SOMA:C_SOMA + 1] * cond[:, C_NOISE:C_NOISE + PARAM_DIM])

    # packed activation via static lane-offset stores -> ONE bf16 cast, ONE first-layer dot
    act_ref[...] = jnp.zeros_like(act_ref)
    act_ref[:, 0:PARAM_DIM] = noisy
    act_ref[:, C_TEMB:C_NOISE] = cond[:, C_TEMB:C_NOISE]   # t_emb | obs_flat | feat_pool
    act_ref[:, A_SIN:A_SIN + THL] = s
    act_ref[:, A_COS:A_COS + THL] = c

    act = act_ref[...].astype(jnp.bfloat16)
    # TODO(synk): stand-in for the undefined `noise_predictor` (MLP over packed conditioning)
    h = jnp.dot(act, w_ref[0:W1_ROWS, :],
                preferred_element_type=jnp.float32) + bias_ref[0:1, :]
    h = jnp.maximum(h, 0.0)
    pred = jnp.dot(h.astype(jnp.bfloat16), w_ref[W1_ROWS:WSLAB_ROWS, :],
                   preferred_element_type=jnp.float32) + bias_ref[1:2, :]

    residual = cond[:, C_NOISE:C_NOISE + PARAM_DIM] - pred[:, 0:PARAM_DIM]
    ss = jnp.sum(jnp.sum(residual * residual, axis=1, keepdims=True),
                 axis=0, keepdims=True)                       # (1, 1)
    loss = ss * (1.0 / (Bq * PARAM_DIM))
    # fold the scalar loss into the packed output slab (full-lane store, no (1,1) output)
    out_ref[:, 2 * THL:] = jnp.broadcast_to(loss, (Bq, out_ref.shape[1] - 2 * THL))


# ----------------------------------- wrapper ---------------------------------------------
@jax.jit
def diff_sysid_forward(observed_tp, observed_data, parameters, noise,
                       sqrt_alpha, sqrt_oma, t_emb, embed_weight, div_half,
                       wslab, bias):
    Bq, Lq = observed_tp.shape

    # pack the small f32 conditioning tensors into one lane-dense (B, 128) array
    feat_pool = jnp.mean(embed_weight, axis=0)                         # (EMB_FEAT,)
    cond = jnp.concatenate([
        parameters,                                                    # (B, 8)
        t_emb,                                                         # (B, 16)
        observed_data.reshape(Bq, -1),                                 # (B, 32)
        jnp.broadcast_to(feat_pool[None, :], (Bq, EMB_FEAT)),          # (B, 16)
        noise,                                                         # (B, 8)
        sqrt_alpha, sqrt_oma,                                          # (B, 1) each
        jnp.zeros((Bq, COND_W - (C_SOMA + 1)), jnp.float32),
    ], axis=1)

    # lane-dense angle operands: angle[b, t*L + l] = tp[b, l] * div[t]
    ang = jnp.concatenate([
        jnp.tile(observed_tp, (1, T_HALF)),                            # (B, 64)
        jnp.broadcast_to(jnp.repeat(div_half, Lq)[None, :], (Bq, THL)),
    ], axis=1)

    out = pl.pallas_call(
        fused_kernel,
        out_shape=jax.ShapeDtypeStruct((Bq, 2 * THL + HIDDEN), jnp.float32),
        in_specs=[pl.BlockSpec(memory_space=pltpu.MemorySpace.VMEM)] * 4,
        out_specs=pl.BlockSpec(memory_space=pltpu.MemorySpace.VMEM),
        scratch_shapes=[pltpu.VMEM((Bq, ACT_W), jnp.float32)],
    )(cond, ang, bias, wslab)

    loss = out[0, 2 * THL]

    # wrapper-side layout plumbing (pure XLA broadcast/reshape):
    #   compact [sin|cos] -> interleaved channels -> K-replication -> + feature slab
    pe = out[:, :2 * THL].reshape(Bq, 2, T_HALF, Lq)
    pe = jnp.transpose(pe, (0, 2, 1, 3)).reshape(Bq, EMB_TIME, Lq)     # [sin0,cos0,sin1,...]
    time_part = jnp.broadcast_to(pe[:, :, None, :], (Bq, EMB_TIME, TS_DIM, Lq))
    feat_part = jnp.broadcast_to(jnp.transpose(embed_weight)[None, :, :, None],
                                 (Bq, EMB_FEAT, TS_DIM, Lq))
    side_info = jnp.concatenate([time_part, feat_part], axis=1)        # (B, C, K, L)
    return side_info, loss


# ----------------------------------- pure-JAX references --------------------------------
def side_info_reference(observed_tp, embed_weight):
    Bq, Lq = observed_tp.shape
    pos = observed_tp[:, :, None]
    div_term = 1.0 / jnp.power(
        10000.0, jnp.arange(0, EMB_TIME, 2, dtype=jnp.float32) / EMB_TIME)
    pe = jnp.stack([jnp.sin(pos * div_term), jnp.cos(pos * div_term)],
                   axis=-1).reshape(Bq, Lq, EMB_TIME)                  # interleaved
    time_embed = jnp.broadcast_to(pe[:, :, None, :], (Bq, Lq, TS_DIM, EMB_TIME))
    feature_embed = jnp.broadcast_to(embed_weight[None, None], (Bq, Lq, TS_DIM, EMB_FEAT))
    si = jnp.concatenate([time_embed, feature_embed], axis=-1)
    return jnp.transpose(si, (0, 3, 2, 1))                             # (B, C, K, L)


def loss_reference(observed_tp, div_half, embed_weight, observed_data,
                   parameters, noise, sqrt_alpha, sqrt_oma, t_emb,
                   w1p, w1e, w1o, w1f, w1s, w1c, b1, w2, b2):
    Bq = observed_tp.shape[0]
    angle = observed_tp[:, None, :] * div_half[None, :, None]          # (B, T/2, L)
    sin_flat = jnp.sin(angle).reshape(Bq, -1)
    cos_flat = jnp.cos(angle).reshape(Bq, -1)
    obs_flat = observed_data.reshape(Bq, -1)
    feat_pool = jnp.broadcast_to(jnp.mean(embed_weight, axis=0)[None, :], (Bq, EMB_FEAT))
    noisy = sqrt_alpha * parameters + sqrt_oma * noise

    def dot(a, w):
        return jnp.dot(a.astype(jnp.bfloat16), w, preferred_element_type=jnp.float32)

    h = (dot(noisy, w1p) + dot(t_emb, w1e) + dot(obs_flat, w1o)
         + dot(feat_pool, w1f) + dot(sin_flat, w1s) + dot(cos_flat, w1c) + b1)
    h = jnp.maximum(h, 0.0)
    predicted = dot(h, w2) + b2
    r = noise - predicted
    return jnp.mean(r * r)


# ----------------------------------- driver ---------------------------------------------
if __name__ == "__main__":
    key = jax.random.PRNGKey(0)
    (k_emb, k_w1p, k_w1e, k_w1o, k_w1f, k_w1s, k_w1c, k_w2, k_b1, k_b2,
     k_data, k_params, k_t, k_noise) = jax.random.split(key, 14)

    # diffusion schedule ('quad'), exactly as in __init__; sqrt() tables precomputed
    beta = np.linspace(BETA_START ** 0.5, BETA_END ** 0.5, NUM_STEPS) ** 2
    alpha = np.cumprod(1.0 - beta)
    sqrt_alpha_tab = jnp.asarray(np.sqrt(alpha), jnp.float32)
    sqrt_oma_tab = jnp.asarray(np.sqrt(1.0 - alpha), jnp.float32)

    # model parameters
    embed_weight = jax.random.normal(k_emb, (TS_DIM, EMB_FEAT), jnp.float32)  # nn.Embedding

    def winit(k, shape):
        return (0.05 * jax.random.normal(k, shape, jnp.float32)).astype(jnp.bfloat16)

    w1p = winit(k_w1p, (PARAM_DIM, HIDDEN))
    w1e = winit(k_w1e, (DIFF_EMB, HIDDEN))
    w1o = winit(k_w1o, (OBS_FLAT, HIDDEN))
    w1f = winit(k_w1f, (EMB_FEAT, HIDDEN))
    w1s = winit(k_w1s, (THL, HIDDEN))
    w1c = winit(k_w1c, (THL, HIDDEN))
    w2 = winit(k_w2, (HIDDEN, PARAM_DIM))
    b1 = 0.01 * jax.random.normal(k_b1, (1, HIDDEN), jnp.float32)
    b2 = 0.01 * jax.random.normal(k_b2, (1, PARAM_DIM), jnp.float32)

    # pack all bf16 weights into ONE (384, 128) slab; biases into ONE (2, 128) f32 array
    w1_packed = jnp.zeros((W1_ROWS, HIDDEN), jnp.bfloat16)
    w1_packed = (w1_packed
                 .at[C_PAR:C_PAR + PARAM_DIM].set(w1p)
                 .at[C_TEMB:C_OBS].set(w1e)
                 .at[C_OBS:C_FEAT].set(w1o)
                 .at[C_FEAT:C_NOISE].set(w1f)
                 .at[A_SIN:A_SIN + THL].set(w1s)
                 .at[A_COS:A_COS + THL].set(w1c))
    w2_full = jnp.zeros((HIDDEN, HIDDEN), jnp.bfloat16).at[:, 0:PARAM_DIM].set(w2)
    wslab = jnp.concatenate([w1_packed, w2_full], axis=0)              # (384, 128) bf16
    bias = (jnp.zeros((2, HIDDEN), jnp.float32)
            .at[0, :].set(b1[0]).at[1, 0:PARAM_DIM].set(b2[0]))

    # TODO(synk): `process_data` is not defined in the reference; synthetic batch here.
    observed_tp = jnp.broadcast_to(jnp.arange(L, dtype=jnp.float32)[None, :], (B, L))
    observed_data = jax.random.normal(k_data, (B, TS_DIM, L), jnp.float32)
    observed_params = jax.random.normal(k_params, (B, PARAM_DIM), jnp.float32)

    # half-size time-embedding frequencies (channel interleave handled by wrapper)
    div_half = 1.0 / jnp.power(
        10000.0, jnp.arange(0, EMB_TIME, 2, dtype=jnp.float32) / EMB_TIME)   # (T/2,)

    # ----- calc_loss (is_train == 1 branch): t ~ randint, noise ~ randn -----
    t = jax.random.randint(k_t, (B,), 0, NUM_STEPS)
    sqrt_alpha = sqrt_alpha_tab[t][:, None]           # (B, 1) = current_alpha ** 0.5
    sqrt_oma = sqrt_oma_tab[t][:, None]               # (B, 1) = (1 - current_alpha) ** 0.5
    noise = jax.random.normal(k_noise, (B, PARAM_DIM), jnp.float32)

    # stand-in diffusion-step embedding for the (undefined) noise_predictor
    half = DIFF_EMB // 2
    freqs = jnp.power(10.0, jnp.arange(half, dtype=jnp.float32) / (half - 1) * 4.0)
    targ = t[:, None].astype(jnp.float32) / freqs[None, :]
    t_emb = jnp.concatenate([jnp.sin(targ), jnp.cos(targ)], axis=1)    # (B, DIFF_EMB)

    side_info, loss = diff_sysid_forward(
        observed_tp, observed_data, observed_params, noise,
        sqrt_alpha, sqrt_oma, t_emb, embed_weight, div_half, wslab, bias)
    loss = jax.block_until_ready(loss)
    side_info = jax.block_until_ready(side_info)

    # correctness gates against pure-JAX references
    si_ref = side_info_reference(observed_tp, embed_weight)
    loss_ref = loss_reference(observed_tp, div_half, embed_weight, observed_data,
                              observed_params, noise, sqrt_alpha, sqrt_oma, t_emb,
                              w1p, w1e, w1o, w1f, w1s, w1c, b1, w2, b2)

    assert side_info.shape == (B, EMB_TOTAL, TS_DIM, L)
    assert bool(jnp.allclose(side_info, si_ref, atol=1e-3, rtol=1e-3))
    assert loss.shape == () and bool(jnp.isfinite(loss))
    assert bool(jnp.allclose(loss, loss_ref, atol=1e-2, rtol=1e-2))
    print("KERNEL_OK")
</pallas_src>

<mosaic_0001>
module attributes {stable_mosaic.version = 11 : i64} {
  func.func @fused_kernel(%arg0: memref<2x128xf32, #tpu.memory_space<vmem>>, %arg1: memref<2x128xf32, #tpu.memory_space<vmem>>, %arg2: memref<2x128xf32, #tpu.memory_space<vmem>>, %arg3: memref<384x128xbf16, #tpu.memory_space<vmem>>, %arg4: memref<2x256xf32, #tpu.memory_space<vmem>>, %arg5: memref<2x256xf32, #tpu.memory_space<vmem>>) attributes {dimension_semantics = [], scalar_prefetch = 0 : i64, scratch_operands = 1 : i64, tpu.core_type = #tpu.core_type<tc>} {
    %c0 = arith.constant 0 : index
    %c0_0 = arith.constant 0 : index
    %0 = vector.load %arg0[%c0, %c0_0] : memref<2x128xf32, #tpu.memory_space<vmem>>, vector<2x128xf32>
    %c0_1 = arith.constant 0 : index
    %c0_2 = arith.constant 0 : index
    %1 = vector.load %arg1[%c0_1, %c0_2] : memref<2x128xf32, #tpu.memory_space<vmem>>, vector<2x128xf32>
    %2 = vector.extract_strided_slice %1 {offsets = [0, 0], sizes = [2, 64], strides = [1, 1]} : vector<2x128xf32> to vector<2x64xf32>
    %3 = vector.extract_strided_slice %1 {offsets = [0, 64], sizes = [2, 64], strides = [1, 1]} : vector<2x128xf32> to vector<2x64xf32>
    %4 = arith.mulf %2, %3 : vector<2x64xf32>
    %5 = math.sin %4 : vector<2x64xf32>
    %6 = math.cos %4 : vector<2x64xf32>
    %c0_3 = arith.constant 0 : index
    %c0_4 = arith.constant 0 : index
    %7 = vector.load %arg4[%c0_3, %c0_4] : memref<2x256xf32, #tpu.memory_space<vmem>>, vector<2x64xf32>
    tpu.vector_store %arg4[%c0_3, %c0_4], %5 {strides = array<i32>} : memref<2x256xf32, #tpu.memory_space<vmem>>, vector<2x64xf32>,
    %c0_5 = arith.constant 0 : index
    %c64 = arith.constant 64 : index
    %8 = vector.load %arg4[%c0_5, %c64] : memref<2x256xf32, #tpu.memory_space<vmem>>, vector<2x64xf32>
    tpu.vector_store %arg4[%c0_5, %c64], %6 {strides = array<i32>} : memref<2x256xf32, #tpu.memory_space<vmem>>, vector<2x64xf32>,
    %9 = vector.extract_strided_slice %0 {offsets = [0, 80], sizes = [2, 1], strides = [1, 1]} : vector<2x128xf32> to vector<2x1xf32>
    %10 = vector.extract_strided_slice %0 {offsets = [0, 0], sizes = [2, 8], strides = [1, 1]} : vector<2x128xf32> to vector<2x8xf32>
    %11 = vector.broadcast %9 : vector<2x1xf32> to vector<2x8xf32>
    %12 = arith.mulf %11, %10 : vector<2x8xf32>
    %13 = vector.extract_strided_slice %0 {offsets = [0, 81], sizes = [2, 1], strides = [1, 1]} : vector<2x128xf32> to vector<2x1xf32>
    %14 = vector.extract_strided_slice %0 {offsets = [0, 72], sizes = [2, 8], strides = [1, 1]} : vector<2x128xf32> to vector<2x8xf32>
    %15 = vector.broadcast %13 : vector<2x1xf32> to vector<2x8xf32>
    %16 = arith.mulf %15, %14 : vector<2x8xf32>
    %17 = arith.addf %12, %16 : vector<2x8xf32>
    %cst = arith.constant 0.000000e+00 : f32
    %18 = vector.broadcast %cst : f32 to vector<2x256xf32>
    %c0_6 = arith.constant 0 : index
    %c0_7 = arith.constant 0 : index
    %19 = vector.load %arg5[%c0_6, %c0_7] : memref<2x256xf32, #tpu.memory_space<vmem>>, vector<2x256xf32>
    tpu.vector_store %arg5[%c0_6, %c0_7], %18 {strides = array<i32>} : memref<2x256xf32, #tpu.memory_space<vmem>>, vector<2x256xf32>,
    %c0_8 = arith.constant 0 : index
    %c0_9 = arith.constant 0 : index
    %20 = vector.load %arg5[%c0_8, %c0_9] : memref<2x256xf32, #tpu.memory_space<vmem>>, vector<2x8xf32>
    tpu.vector_store %arg5[%c0_8, %c0_9], %17 {strides = array<i32>} : memref<2x256xf32, #tpu.memory_space<vmem>>, vector<2x8xf32>,
    %21 = vector.extract_strided_slice %0 {offsets = [0, 8], sizes = [2, 64], strides = [1, 1]} : vector<2x128xf32> to vector<2x64xf32>
    %c0_10 = arith.constant 0 : index
    %c8 = arith.constant 8 : index
    %22 = vector.load %arg5[%c0_10, %c8] : memref<2x256xf32, #tpu.memory_space<vmem>>, vector<2x64xf32>
    tpu.vector_store %arg5[%c0_10, %c8], %21 {strides = array<i32>} : memref<2x256xf32, #tpu.memory_space<vmem>>, vector<2x64xf32>,
    %c0_11 = arith.constant 0 : index
    %c72 = arith.constant 72 : index
    %23 = vector.load %arg5[%c0_11, %c72] : memref<2x256xf32, #tpu.memory_space<vmem>>, vector<2x64xf32>
    tpu.vector_store %arg5[%c0_11, %c72], %5 {strides = array<i32>} : memref<2x256xf32, #tpu.memory_space<vmem>>, vector<2x64xf32>,
    %c0_12 = arith.constant 0 : index
    %c136 = arith.constant 136 : index
    %24 = vector.load %arg5[%c0_12, %c136] : memref<2x256xf32, #tpu.memory_space<vmem>>, vector<2x64xf32>
    tpu.vector_store %arg5[%c0_12, %c136], %6 {strides = array<i32>} : memref<2x256xf32, #tpu.memory_space<vmem>>, vector<2x64xf32>,
    %c0_13 = arith.constant 0 : index
    %c0_14 = arith.constant 0 : index
    %25 = vector.load %arg5[%c0_13, %c0_14] : memref<2x256xf32, #tpu.memory_space<vmem>>, vector<2x256xf32>
    %26 = arith.truncf %25 : vector<2x256xf32> to vector<2x256xbf16>
    %c0_15 = arith.constant 0 : index
    %c0_16 = arith.constant 0 : index
    %27 = vector.load %arg3[%c0_15, %c0_16] : memref<384x128xbf16, #tpu.memory_space<vmem>>, vector<256x128xbf16>
    %cst_17 = arith.constant dense<0.000000e+00> : vector<2x128xf32>
    %28 = tpu.matmul %26, %27, %cst_17 {dimension_numbers = #tpu.dot_dimension_numbers<[1], [0], [0], [1], [0, 0, 1, 1], [], []>} : vector<2x256xbf16>, vector<256x128xbf16>, vector<2x128xf32> -> vector<2x128xf32>
    %c0_18 = arith.constant 0 : index
    %c0_19 = arith.constant 0 : index
    %29 = vector.load %arg2[%c0_18, %c0_19] : memref<2x128xf32, #tpu.memory_space<vmem>>, vector<1x128xf32>
    %30 = vector.broadcast %29 : vector<1x128xf32> to vector<2x128xf32>
    %31 = arith.addf %28, %30 : vector<2x128xf32>
    %cst_20 = arith.constant 0.000000e+00 : f32
    %32 = vector.broadcast %cst_20 : f32 to vector<2x128xf32>
    %33 = arith.maximumf %31, %32 : vector<2x128xf32>
    %34 = arith.truncf %33 : vector<2x128xf32> to vector<2x128xbf16>
    %c256 = arith.constant 256 : index
    %c0_21 = arith.constant 0 : index
    %35 = vector.load %arg3[%c256, %c0_21] : memref<384x128xbf16, #tpu.memory_space<vmem>>, vector<128x128xbf16>
    %cst_22 = arith.constant dense<0.000000e+00> : vector<2x128xf32>
    %36 = tpu.matmul %34, %35, %cst_22 {dimension_numbers = #tpu.dot_dimension_numbers<[1], [0], [0], [1], [0, 0, 1, 1], [], []>} : vector<2x128xbf16>, vector<128x128xbf16>, vector<2x128xf32> -> vector<2x128xf32>
    %c1 = arith.constant 1 : index
    %c0_23 = arith.constant 0 : index
    %37 = vector.load %arg2[%c1, %c0_23] : memref<2x128xf32, #tpu.memory_space<vmem>>, vector<1x128xf32>
    %38 = vector.broadcast %37 : vector<1x128xf32> to vector<2x128xf32>
    %39 = arith.addf %36, %38 : vector<2x128xf32>
    %40 = vector.extract_strided_slice %0 {offsets = [0, 72], sizes = [2, 8], strides = [1, 1]} : vector<2x128xf32> to vector<2x8xf32>
    %41 = vector.extract_strided_slice %39 {offsets = [0, 0], sizes = [2, 8], strides = [1, 1]} : vector<2x128xf32> to vector<2x8xf32>
    %42 = arith.subf %40, %41 : vector<2x8xf32>
    %43 = arith.mulf %42, %42 : vector<2x8xf32>
    %cst_24 = arith.constant dense<0.000000e+00> : vector<2xf32>
    %44 = vector.multi_reduction <add>, %43, %cst_24 [1] : vector<2x8xf32> to vector<2xf32>
    %45 = vector.shape_cast %44 : vector<2xf32> to vector<2x1xf32>
    %cst_25 = arith.constant dense<0.000000e+00> : vector<1xf32>
    %46 = vector.multi_reduction <add>, %45, %cst_25 [0] : vector<2x1xf32> to vector<1xf32>
    %47 = vector.shape_cast %46 : vector<1xf32> to vector<1x1xf32>
    %cst_26 = arith.constant 6.250000e-02 : f32
    %48 = vector.broadcast %cst_26 : f32 to vector<1x1xf32>
    %49 = arith.mulf %47, %48 : vector<1x1xf32>
    %50 = vector.shape_cast %49 : vector<1x1xf32> to vector<1x1xf32>
    %51 = vector.broadcast %50 : vector<1x1xf32> to vector<2x128xf32>
    %c0_27 = arith.constant 0 : index
    %c128 = arith.constant 128 : index
    %52 = vector.load %arg4[%c0_27, %c128] : memref<2x256xf32, #tpu.memory_space<vmem>>, vector<2x128xf32>
    tpu.vector_store %arg4[%c0_27, %c128], %51 {strides = array<i32>} : memref<2x256xf32, #tpu.memory_space<vmem>>, vector<2x128xf32>,
    return
  }
}

</mosaic_0001>

<llo_original>
// kernel: tile.9
$region0: #{tile.9}
  %s0 = inlined_call_operand.vmem [shape: f32[2,8,8], index: 0, kind: input, shape index: {}]
  %s1 = inlined_call_operand.vmem [shape: f32[2,64], index: 1, kind: output, shape index: {}]
  $region1: #{tile.9} parent=0
    #allocation0 [shape = 'u8[4096]{0}', space=vmem, size = 0x1000, scoped, tag = 'scoped mem for output reshape']
    %s2 = smov 3
    %v3 = vld [vmem:[%s0] ss:$8 sm:%s2]
    %vm4 = vcmask 64512
    %5 = vst.msk [vmem:[#allocation0] sm:$0x3] %vm4, %v3
    %s6 = scalar_lea.vmem %s0, 7
    %s7 = smov 3
    %v8 = vld [vmem:[%s6] ss:$8 sm:%s7]
    %9 = vrot.lane.b32.xlu0 %v8, 56
    %v10 = vpop.permute.xlu0 %9
    %vm11 = vcmask 523712
    %12 = vst.msk [vmem:[#allocation0] sm:$0x3] %vm11, %v10
    %s13 = scalar_lea.vmem %s0, 6
    %s14 = smov 3
    %v15 = vld [vmem:[%s13] ss:$8 sm:%s14]
    %16 = vrot.lane.b32.xlu0 %v15, 48
    %v17 = vpop.permute.xlu0 %16
    %vm18 = vcmask 458112
    %19 = vst.msk [vmem:[#allocation0] sm:$0x3] %vm18, %v17
    %s20 = scalar_lea.vmem %s0, 5
    %s21 = smov 3
    %v22 = vld [vmem:[%s20] ss:$8 sm:%s21]
    %23 = vrot.lane.b32.xlu0 %v22, 40
    %v24 = vpop.permute.xlu0 %23
    %vm25 = vcmask 392512
    %26 = vst.msk [vmem:[#allocation0] sm:$0x3] %vm25, %v24
    %s27 = scalar_lea.vmem %s0, 4
    %s28 = smov 3
    %v29 = vld [vmem:[%s27] ss:$8 sm:%s28]
    %30 = vrot.lane.b32.xlu0 %v29, 32
    %v31 = vpop.permute.xlu0 %30
    %vm32 = vcmask 326912
    %33 = vst.msk [vmem:[#allocation0] sm:$0x3] %vm32, %v31
    %s34 = scalar_lea.vmem %s0, 3
    %s35 = smov 3
    %v36 = vld [vmem:[%s34] ss:$8 sm:%s35]
    %37 = vrot.lane.b32.xlu0 %v36, 24
    %v38 = vpop.permute.xlu0 %37
    %vm39 = vcmask 261312
    %40 = vst.msk [vmem:[#allocation0] sm:$0x3] %vm39, %v38
    %s41 = scalar_lea.vmem %s0, 2
    %s42 = smov 3
    %v43 = vld [vmem:[%s41] ss:$8 sm:%s42]
    %44 = vrot.lane.b32.xlu0 %v43, 16
    %v45 = vpop.permute.xlu0 %44
    %vm46 = vcmask 195712
    %47 = vst.msk [vmem:[#allocation0] sm:$0x3] %vm46, %v45
    %s48 = scalar_lea.vmem %s0, 1
    %s49 = smov 3
    %v50 = vld [vmem:[%s48] ss:$8 sm:%s49]
    %51 = vrot.lane.b32.xlu0 %v50, 8
    %v52 = vpop.permute.xlu0 %51
    %vm53 = vcmask 130112
    %54 = vst.msk [vmem:[#allocation0] sm:$0x3] %vm53, %v52
    %s56 = sshllo.u32 0, 2
    %v58 = vld [vmem:[#allocation0] sm:%s56]
    %s59 = sshllo.u32 0, 2
    %60 = vst [vmem:[%s1] sm:%s59] %v58

// kernel: diff_sysid_forward.1
$region0: #{diff_sysid_forward.1}
  #allocation0 [shape = 'u32[]', space=smem, size = 0x4, offset = 0x4, fixed_abs, tag = 'smem constant byte address 0x4 - core index']
  #allocation1 [shape = 'u32[144,128]{1,0:T(1,128)}', space=vmem, size = 0x12000, scoped, tag = 'internal scratch']
  #allocation2 [shape = 'f32[2,256]{1,0:T(2,128)}', space=vmem, size = 0x800, scoped, tag = 'scratch operand']
  %s0 = inlined_call_operand.vmem [shape: f32[2,128], index: 0, kind: input, shape index: {}]
  %s1 = inlined_call_operand.vmem [shape: f32[2,128], index: 1, kind: input, shape index: {}]
  %s2 = inlined_call_operand.vmem [shape: f32[2,128], index: 2, kind: input, shape index: {}]
  %s3 = inlined_call_operand.hbm [shape: bf16[384,128], index: 3, kind: input, shape index: {}]
  %s4 = inlined_call_operand.vmem [shape: f32[2,256], index: 4, kind: output, shape index: {}]
  %s5 = sld [smem:[#allocation0]]
  $region30: #{diff_sysid_forward.1} parent=0
    _
  %s7 = ssub.s32 1, %s5
  %s8 = scalar_select 0, %s7, %s5
  $region1: #{diff_sysid_forward.1} parent=0
    #allocation3 [shape = 'u8[98304]{0}', space=vmem, size = 0x18000, scoped, tag = 'input window, operand 3, single buffered']
    #allocation4 [shape = 's32[1]{0}', space=sflag, size = 0x4, scoped, tag = 'scoped memory for diff_sysid_forward.1']
    %9 = vsyncpa [#allocation4], 0
    // Predicated region
    $region2: #{diff_sysid_forward.1} parent=1 // pred_check
      _
    $region3: #{diff_sysid_forward.1} parent=1 // pred_check_branch
      %11 = sbr.rel (0) target = $region5
    $region4: #{diff_sysid_forward.1} parent=1 // pred_region
      _
    $region5: #{diff_sysid_forward.1} parent=1 // pred_fallthru
      _
    // Predicated region
    $region6: #{diff_sysid_forward.1} parent=1 // pred_check
      _
    $region7: #{diff_sysid_forward.1} parent=1 // pred_check_branch
      %13 = sbr.rel (0) target = $region9
    $region8: #{diff_sysid_forward.1} parent=1 // pred_region
      _
    $region9: #{diff_sysid_forward.1} parent=1 // pred_fallthru
      _
    // Predicated region
    $region10: #{diff_sysid_forward.1} parent=1 // pred_check
      _
    $region11: #{diff_sysid_forward.1} parent=1 // pred_check_branch
      %15 = sbr.rel (0) target = $region13
    $region12: #{diff_sysid_forward.1} parent=1 // pred_region
      _
    $region13: #{diff_sysid_forward.1} parent=1 // pred_fallthru
      _
    // Predicated region
    $region14: #{diff_sysid_forward.1} parent=1 // pred_check
      _
    $region15: #{diff_sysid_forward.1} parent=1 // pred_check_branch
      %17 = sbr.rel (0) target = $region17
    $region16: #{diff_sysid_forward.1} parent=1 // pred_region
      %s19 = ssub.s32 3072, 3072
      %20 = vsyncadd [#allocation4], %s19
      %s21 = sshll.u32 [#allocation3], 4
      %s22 = int_to_ptr.vmem [resolvable:$true] %s21
      %27 = dma.hbm_to_vmem [thread:$0]  %s3, 3072, %s22, [#allocation4], 64, 64, 4
    $region17: #{diff_sysid_forward.1} parent=1 // pred_fallthru
      _
    // Predicated region
    $region18: #{diff_sysid_forward.1} parent=1 // pred_check
      _
    $region19: #{diff_sysid_forward.1} parent=1 // pred_check_branch
      %29 = sbr.rel (0) target = $region21
    $region20: #{diff_sysid_forward.1} parent=1 // pred_region
      %30 = dma.done [#allocation4], 3072
    $region21: #{diff_sysid_forward.1} parent=1 // pred_fallthru
      _
    %v32 = vld [vmem:[%s0] sm:$0x3]
    %v33 = vld [vmem:[%s1] sm:$0x3]
    %35 = vrot.lane.b32.xlu0 %v33, 64
    %v36 = vpop.permute.xlu0 %35
    %v38 = vmul.f32 %v33, %v36
    %v39 = vand.u32 2147483647, %v38
    %vm40 = vcmp.le.f32.partialorder %v39, 0.7853982
    %vm41 = vcmp.lt.s32.totalorder %v38, 0
    %v42 = vand.u32 %v38, 2139095040
    %v43 = vshrl.u32 %v42, 23
    %v44 = vsub.s32 %v43, 127
    %v45 = vand.u32 2147483647, %v38
    %v46 = vand.u32 %v45, 8388607
    %v47 = vor.u32 %v46, 8388608
    %v48 = vsub.s32 0, %v47
    %v49 = vadd.s32 %v44, 1
    %vm50 = vcmp.gt.s32.totalorder %v49, 0
    %v51 = vsel %vm50, %v49, 0
    %v52 = vshrl.u32 %v51, 5
    %v53 = vand.u32 %v51, 31
    %v54 = vsub.s32 32, %v53
    %v55 = vshrl.u32 683565275, %v54
    %v56 = vshll.u32 683565275, %v53
    %v57 = vshrl.u32 2475754826, %v54
    %v58 = vor.u32 %v56, %v57
    %v59 = vshll.u32 2475754826, %v53
    %v60 = vshrl.u32 2131351028, %v54
    %v61 = vor.u32 %v59, %v60
    %v62 = vshll.u32 2131351028, %v53
    %v63 = vshrl.u32 2102212464, %v54
    %v64 = vor.u32 %v62, %v63
    %v65 = vshll.u32 2102212464, %v53
    %v66 = vshrl.u32 920167782, %v54
    %v67 = vor.u32 %v65, %v66
    %v68 = vshll.u32 920167782, %v53
    %v69 = vshrl.u32 1326507024, %v54
    %v70 = vor.u32 %v68, %v69
    %vm71 = vcmp.lt.s32.totalorder %v52, 1
    %vm72 = vcmp.lt.s32.totalorder %v52, 2
    %vm73 = vcmp.lt.s32.totalorder %v52, 3
    %vm74 = vcmp.lt.s32.totalorder %v52, 4
    %v75 = vsel %vm71, %v55, %v58
    %v76 = vsel %vm74, %v64, 2102212464
    %v77 = vsel %vm73, %v61, %v76
    %v78 = vsel %vm72, %v75, %v77
    %v79 = vsel %vm71, %v58, %v61
    %v80 = vsel %vm74, %v67, 920167782
    %v81 = vsel %vm73, %v64, %v80
    %v82 = vsel %vm72, %v79, %v81
    %v83 = vsel %vm71, %v61, %v64
    %v84 = vsel %vm74, %v70, 1326507024
    %v85 = vsel %vm73, %v67, %v84
    %v86 = vsel %vm72, %v83, %v85
    %v87 = vshll.u32 %v47, 8
    %v88 = vmul.u32.u64.compose %v87, %v86
    %v89 = vextract.low.u32 %v88
    %v90 = vextract.high.u32 %v88
    %v91 = vmul.u32.u64.compose %v87, %v82
    %v92 = vextract.low.u32 %v91
    %v93 = vextract.high.u32 %v91
    %v94 = vmul.u32 %v87, %v78
    %v95 = vadd.s32 %v90, %v92
    %vm96 = vc.u32 %v90, %v92
    %v97 = vadd.s32 %v93, 1
    %v98 = vsel %vm96, %v97, %v93
    %v99 = vadd.s32 %v94, %v98
    %v100 = vadd.s32 %v99, 536870912
    %v101 = vshrl.u32 %v100, 30
    %v102 = vshll.u32 %v101, 30
    %v103 = vsub.s32 %v99, %v102
    %vm104 = vcmp.lt.s32.totalorder %v103, 0
    %v105 = vsub.s32 0, %v103
    %v106 = vsel %vm104, %v105, %v103
    %v107 = vclz %v106
    %v108 = vsub.s32 %v107, 2
    %vm109 = vcmp.gt.s32.totalorder 0, %v108
    %v110 = vsel %vm109, 0, %v108
    %v111 = vsub.s32 32, %v110
    %v112 = vshll.u32 %v103, %v110
    %v113 = vshrl.u32 %v95, %v111
    %v114 = vor.u32 %v112, %v113
    %v115 = vsub.s32 4294967266, %v110
    %v116 = vadd.s32 %v115, 127
    %v117 = vshll.u32 %v116, 23
    %v118 = vor.u32 4788187, %v117
    %v119 = vand.u32 2147483647, %v118
    %v121 = vcvt.s32.f32 %v114
    %v122 = vmul.f32 %v121, %v119
    %v123 = vxor.u32 %v122, 2147483648
    %v124 = vsel %vm41, %v123, %v122
    %v125 = vsub.s32 4, %v101
    %v126 = vsel %vm41, %v125, %v101
    %v127 = vsel %vm40, %v38, %v124
    %v128 = vsel %vm40, 0, %v126
    %v129 = vcosq.f32.pop %v127
    %v130 = vsinq.f32.pop %v127
    %vm131 = vweird.f32 %v38
    %v132 = vadd.s32 %v128, 3
    %v133 = vand.u32 %v132, 3
    %vm134 = vcmp.lt.s32.totalorder %v133, 2
    %vm135 = vcmp.eq.s32.totalorder %v133, 0
    %v136 = vxor.u32 %v130, 2147483648
    %v137 = vsel %vm135, %v129, %v136
    %vm138 = vcmp.eq.s32.totalorder %v133, 2
    %v139 = vxor.u32 %v129, 2147483648
    %v140 = vsel %vm138, %v139, %v130
    %v141 = vsel %vm134, %v137, %v140
    %v142 = vsel %vm131, nan, %v141
    %v143 = vand.u32 2147483647, %v38
    %vm144 = vcmp.le.f32.partialorder %v143, 0.7853982
    %vm145 = vcmp.lt.s32.totalorder %v38, 0
    %v146 = vand.u32 %v38, 2139095040
    %v147 = vshrl.u32 %v146, 23
    %v148 = vsub.s32 %v147, 127
    %v149 = vand.u32 2147483647, %v38
    %v150 = vand.u32 %v149, 8388607
    %v151 = vor.u32 %v150, 8388608
    %v152 = vsub.s32 0, %v151
    %v153 = vadd.s32 %v148, 1
    %vm154 = vcmp.gt.s32.totalorder %v153, 0
    %v155 = vsel %vm154, %v153, 0
    %v156 = vshrl.u32 %v155, 5
    %v157 = vand.u32 %v155, 31
    %v158 = vsub.s32 32, %v157
    %v159 = vshrl.u32 683565275, %v158
    %v160 = vshll.u32 683565275, %v157
    %v161 = vshrl.u32 2475754826, %v158
    %v162 = vor.u32 %v160, %v161
    %v163 = vshll.u32 2475754826, %v157
    %v164 = vshrl.u32 2131351028, %v158
    %v165 = vor.u32 %v163, %v164
    %v166 = vshll.u32 2131351028, %v157
    %v167 = vshrl.u32 2102212464, %v158
    %v168 = vor.u32 %v166, %v167
    %v169 = vshll.u32 2102212464, %v157
    %v170 = vshrl.u32 920167782, %v158
    %v171 = vor.u32 %v169, %v170
    %v172 = vshll.u32 920167782, %v157
    %v173 = vshrl.u32 1326507024, %v158
    %v174 = vor.u32 %v172, %v173
    %vm175 = vcmp.lt.s32.totalorder %v156, 1
    %vm176 = vcmp.lt.s32.totalorder %v156, 2
    %vm177 = vcmp.lt.s32.totalorder %v156, 3
    %vm178 = vcmp.lt.s32.totalorder %v156, 4
    %v179 = vsel %vm175, %v159, %v162
    %v180 = vsel %vm178, %v168, 2102212464
    %v181 = vsel %vm177, %v165, %v180
    %v182 = vsel %vm176, %v179, %v181
    %v183 = vsel %vm175, %v162, %v165
    %v184 = vsel %vm178, %v171, 920167782
    %v185 = vsel %vm177, %v168, %v184
    %v186 = vsel %vm176, %v183, %v185
    %v187 = vsel %vm175, %v165, %v168
    %v188 = vsel %vm178, %v174, 1326507024
    %v189 = vsel %vm177, %v171, %v188
    %v190 = vsel %vm176, %v187, %v189
    %v191 = vshll.u32 %v151, 8
    %v192 = vmul.u32.u64.compose %v191, %v190
    %v193 = vextract.low.u32 %v192
    %v194 = vextract.high.u32 %v192
    %v195 = vmul.u32.u64.compose %v191, %v186
    %v196 = vextract.low.u32 %v195
    %v197 = vextract.high.u32 %v195
    %v198 = vmul.u32 %v191, %v182
    %v199 = vadd.s32 %v194, %v196
    %vm200 = vc.u32 %v194, %v196
    %v201 = vadd.s32 %v197, 1
    %v202 = vsel %vm200, %v201, %v197
    %v203 = vadd.s32 %v198, %v202
    %v204 = vadd.s32 %v203, 536870912
    %v205 = vshrl.u32 %v204, 30
    %v206 = vshll.u32 %v205, 30
    %v207 = vsub.s32 %v203, %v206
    %vm208 = vcmp.lt.s32.totalorder %v207, 0
    %v209 = vsub.s32 0, %v207
    %v210 = vsel %vm208, %v209, %v207
    %v211 = vclz %v210
    %v212 = vsub.s32 %v211, 2
    %vm213 = vcmp.gt.s32.totalorder 0, %v212
    %v214 = vsel %vm213, 0, %v212
    %v215 = vsub.s32 32, %v214
    %v216 = vshll.u32 %v207, %v214
    %v217 = vshrl.u32 %v199, %v215
    %v218 = vor.u32 %v216, %v217
    %v219 = vsub.s32 4294967266, %v214
    %v220 = vadd.s32 %v219, 127
    %v221 = vshll.u32 %v220, 23
    %v222 = vor.u32 4788187, %v221
    %v223 = vand.u32 2147483647, %v222
    %v225 = vcvt.s32.f32 %v218
    %v226 = vmul.f32 %v225, %v223
    %v227 = vxor.u32 %v226, 2147483648
    %v228 = vsel %vm145, %v227, %v226
    %v229 = vsub.s32 4, %v205
    %v230 = vsel %vm145, %v229, %v205
    %v231 = vsel %vm144, %v38, %v228
    %v232 = vsel %vm144, 0, %v230
    %v233 = vcosq.f32.pop %v231
    %v234 = vsinq.f32.pop %v231
    %vm235 = vweird.f32 %v38
    %v236 = vand.u32 %v232, 3
    %vm237 = vcmp.lt.s32.totalorder %v236, 2
    %vm238 = vcmp.eq.s32.totalorder %v236, 0
    %v239 = vxor.u32 %v234, 2147483648
    %v240 = vsel %vm238, %v233, %v239
    %vm241 = vcmp.eq.s32.totalorder %v236, 2
    %v242 = vxor.u32 %v233, 2147483648
    %v243 = vsel %vm241, %v242, %v234
    %v244 = vsel %vm237, %v240, %v243
    %v245 = vsel %vm235, nan, %v244
    %vm246 = vcmask 517120
    %247 = vst.msk [vmem:[%s4] sm:$0x3] %vm246, %v142
    %v250 = vunpack.c.l.s4 1983009808
    %v251 = vunpack.c.0.s8 %v250
    %v252 = vlaneseq
    %v253 = vshrl.u32 %v252, 7
    %v254 = vsub.s32 %v251, %v253
    %v255 = vrot.slane %v245, %v254
    %256 = vrot.lane.b32.xlu0 %v255, 64
    %v257 = vpop.permute.xlu0 %256
    %vm259 = vcmask 1041920
    %260 = vst.msk [vmem:[%s4] sm:$0x3] %vm259, %v257
    %262 = vset.pattern.permute.xlu0 80
    %263 = vperm.xlu0 %262, %v32
    %v264 = vpop.permute.xlu0 %263
    %v266 = vmul.f32 %v264, %v32
    %267 = vset.pattern.permute.xlu0 81
    %268 = vperm.xlu0 %267, %v32
    %v269 = vpop.permute.xlu0 %268
    %v271 = vmul.f32 %v269, %v32
    %273 = vrot.lane.b32.xlu0 %v271, 56
    %v274 = vpop.permute.xlu0 %273
    %v276 = vadd.f32 %v266, %v274
    %277 = vst [vmem:[#allocation2] sm:$0xf] 0.0
    %vm278 = vcmask 58368
    %279 = vst.msk [vmem:[#allocation2] sm:$0x3] %vm278, %v276
    %vm280 = vcmask 582720
    %281 = vst.msk [vmem:[#allocation2] sm:$0x3] %vm280, %v32
    %v284 = vunpack.c.l.s4 1983009808
    %v285 = vunpack.c.0.s8 %v284
    %v286 = vlaneseq
    %v287 = vshrl.u32 %v286, 7
    %v288 = vsub.s32 %v285, %v287
    %v289 = vrot.slane %v142, %v288
    %290 = vrot.lane.b32.xlu0 %v289, 72
    %v291 = vpop.permute.xlu0 %290
    %v292 = vrot.slane %v291, 6
    %vm293 = vcmask 588800
    %v294 = vsel %vm293, %v292, %v291
    %vm296 = vcmask 1041984
    %vm297 = vcmask 60418
    %vm298 = vmor %vm297, %vm296
    %299 = vst.msk [vmem:[#allocation2] sm:$0xf] %vm298, %v294
    %300 = vrot.lane.b32.xlu0 %v255, 8
    %v301 = vpop.permute.xlu0 %300
    %303 = vst.msk [vmem:[#allocation2 + $0x2] sm:$0x3] %vm280, %v301
    %v304 = vld [vmem:[#allocation2] sm:$0xf]
    %v307 = vunpack.c.l.s4 1983009808
    %v308 = vunpack.c.0.s8 %v307
    %v309 = vlaneseq
    %v310 = vshrl.u32 %v309, 7
    %v311 = vsub.s32 %v308, %v310
    %v312 = vrot.slane %v304, %v311
    %v313 = vcombine.high %v312, %v312
    %v316 = vpack.c.bf16 %v312, %v312
    %v317 = vpack.c.bf16 %v313, %v313
    %v318 = vld [vmem:[#allocation3] sm:$0xf]
    %v319 = vld [vmem:[#allocation3 + $0x4] sm:$0xf]
    %v320 = vld [vmem:[#allocation3 + $0x8] sm:$0xf]
    %v321 = vld [vmem:[#allocation3 + $0xc] sm:$0xf]
    %v322 = vld [vmem:[#allocation3 + $0x10] sm:$0xf]
    %v323 = vld [vmem:[#allocation3 + $0x14] sm:$0xf]
    %v324 = vld [vmem:[#allocation3 + $0x18] sm:$0xf]
    %v325 = vld [vmem:[#allocation3 + $0x1c] sm:$0xf]
    %v326 = vld [vmem:[#allocation3 + $0x20] sm:$0xf]
    %v327 = vld [vmem:[#allocation3 + $0x24] sm:$0xf]
    %v328 = vld [vmem:[#allocation3 + $0x28] sm:$0xf]
    %v329 = vld [vmem:[#allocation3 + $0x2c] sm:$0xf]
    %v330 = vld [vmem:[#allocation3 + $0x30] sm:$0xf]
    %v331 = vld [vmem:[#allocation3 + $0x34] sm:$0xf]
    %v332 = vld [vmem:[#allocation3 + $0x38] sm:$0xf]
    %v333 = vld [vmem:[#allocation3 + $0x3c] sm:$0xf]
    %v334 = vld [vmem:[#allocation3 + $0x40] sm:$0xf]
    %v335 = vld [vmem:[#allocation3 + $0x44] sm:$0xf]
    %v336 = vld [vmem:[#allocation3 + $0x48] sm:$0xf]
    %v337 = vld [vmem:[#allocation3 + $0x4c] sm:$0xf]
    %v338 = vld [vmem:[#allocation3 + $0x50] sm:$0xf]
    %v339 = vld [vmem:[#allocation3 + $0x54] sm:$0xf]
    %v340 = vld [vmem:[#allocation3 + $0x58] sm:$0xf]
    %v341 = vld [vmem:[#allocation3 + $0x5c] sm:$0xf]
    %v342 = vld [vmem:[#allocation3 + $0x60] sm:$0xf]
    %v343 = vld [vmem:[#allocation3 + $0x64] sm:$0xf]
    %v344 = vld [vmem:[#allocation3 + $0x68] sm:$0xf]
    %v345 = vld [vmem:[#allocation3 + $0x6c] sm:$0xf]
    %v346 = vld [vmem:[#allocation3 + $0x70] sm:$0xf]
    %v347 = vld [vmem:[#allocation3 + $0x74] sm:$0xf]
    %v348 = vld [vmem:[#allocation3 + $0x78] sm:$0xf]
    %v349 = vld [vmem:[#allocation3 + $0x7c] sm:$0xf]
    %v350 = vld [vmem:[%s2] sm:$0x1]
    %v351 = vlaneseq
    %v352 = vshrl.u32 %v351, 7
    %v353 = vsub.s32 0, %v352
    %v354 = vrot.slane %v350, %v353
    %v387 = vunpack.c.l.b16 %v318
    %v388 = vunpack.c.l.b16 %v319
    %v389 = vunpack.c.l.b16 %v320
    %v390 = vunpack.c.l.b16 %v321
    %v391 = vunpack.c.l.b16 %v322
    %v392 = vunpack.c.l.b16 %v323
    %v393 = vunpack.c.l.b16 %v324
    %v394 = vunpack.c.l.b16 %v325
    %v395 = vunpack.c.l.b16 %v326
    %v396 = vunpack.c.l.b16 %v327
    %v397 = vunpack.c.l.b16 %v328
    %v398 = vunpack.c.l.b16 %v329
    %v399 = vunpack.c.l.b16 %v330
    %v400 = vunpack.c.l.b16 %v331
    %v401 = vunpack.c.l.b16 %v332
    %v402 = vunpack.c.l.b16 %v333
    %v403 = vunpack.c.l.b16 %v334
    %v404 = vunpack.c.l.b16 %v335
    %v405 = vunpack.c.l.b16 %v336
    %v406 = vunpack.c.l.b16 %v337
    %v407 = vunpack.c.l.b16 %v338
    %v408 = vunpack.c.l.b16 %v339
    %v409 = vunpack.c.l.b16 %v340
    %v410 = vunpack.c.l.b16 %v341
    %v411 = vunpack.c.l.b16 %v342
    %v412 = vunpack.c.l.b16 %v343
    %v413 = vunpack.c.l.b16 %v344
    %v414 = vunpack.c.l.b16 %v345
    %v415 = vunpack.c.l.b16 %v346
    %v416 = vunpack.c.l.b16 %v347
    %v417 = vunpack.c.l.b16 %v348
    %v418 = vunpack.c.l.b16 %v349
    %v419 = vpack.c.b16 %v388, %v387
    %v420 = vpack.c.b16 %v390, %v389
    %v421 = vpack.c.b16 %v392, %v391
    %v422 = vpack.c.b16 %v394, %v393
    %v423 = vpack.c.b16 %v396, %v395
    %v424 = vpack.c.b16 %v398, %v397
    %v425 = vpack.c.b16 %v400, %v399
    %v426 = vpack.c.b16 %v402, %v401
    %v427 = vpack.c.b16 %v404, %v403
    %v428 = vpack.c.b16 %v406, %v405
    %v429 = vpack.c.b16 %v408, %v407
    %v430 = vpack.c.b16 %v410, %v409
    %v431 = vpack.c.b16 %v412, %v411
    %v432 = vpack.c.b16 %v414, %v413
    %v433 = vpack.c.b16 %v416, %v415
    %v434 = vpack.c.b16 %v418, %v417
    %451 = vmatprep.subr.bf16.mxu0 0
    %452 = vmatpush1.bf16.msra.mxu0 %v419
    %453 = vmatprep.subr.bf16.mxu0 0
    %454 = vmatpush1.bf16.msra.mxu0 %v420
    %455 = vmatprep.subr.bf16.mxu0 0
    %456 = vmatpush1.bf16.msra.mxu0 %v421
    %457 = vmatprep.subr.bf16.mxu0 0
    %458 = vmatpush1.bf16.msra.mxu0 %v422
    %459 = vmatprep.subr.bf16.mxu0 0
    %460 = vmatpush1.bf16.msra.mxu0 %v423
    %461 = vmatprep.subr.bf16.mxu0 0
    %462 = vmatpush1.bf16.msra.mxu0 %v424
    %463 = vmatprep.subr.bf16.mxu0 0
    %464 = vmatpush1.bf16.msra.mxu0 %v425
    %465 = vmatprep.subr.bf16.mxu0 0
    %466 = vmatpush1.bf16.msra.mxu0 %v426
    %467 = vmatprep.subr.bf16.mxu0 0
    %468 = vmatpush1.bf16.msra.mxu0 %v427
    %469 = vmatprep.subr.bf16.mxu0 0
    %470 = vmatpush1.bf16.msra.mxu0 %v428
    %471 = vmatprep.subr.bf16.mxu0 0
    %472 = vmatpush1.bf16.msra.mxu0 %v429
    %473 = vmatprep.subr.bf16.mxu0 0
    %474 = vmatpush1.bf16.msra.mxu0 %v430
    %475 = vmatprep.subr.bf16.mxu0 0
    %476 = vmatpush1.bf16.msra.mxu0 %v431
    %477 = vmatprep.subr.bf16.mxu0 0
    %478 = vmatpush1.bf16.msra.mxu0 %v432
    %479 = vmatprep.subr.bf16.mxu0 0
    %480 = vmatpush1.bf16.msra.mxu0 %v433
    %481 = vmatprep.subr.bf16.mxu0 0
    %482 = vmatpush1.bf16.msra.mxu0 %v434
    %483 = vmatprep.mubr.bf16.mxu0 %v317
    %484 = vmatmul.mubr.bf16.gmra.mrb[0].mxu0 %v316
    %v485 = vpop.f32.mrb[0].mxu0
    %v486 = vadd.f32 %v354, %v485
    %v487 = vpop.f32.mrb[0].mxu0
    %v488 = vpop.f32.mrb[0].mxu0
    %v489 = vpop.f32.mrb[0].mxu0
    %490 = vdwg.mxu0
    %v491 = vmax.f32 %v486, 0.0
    %v492 = vpack.c.bf16 %v491, %v491
    %v493 = vld [vmem:[#allocation3 + $0x80] sm:$0xf]
    %v494 = vld [vmem:[#allocation3 + $0x84] sm:$0xf]
    %v495 = vld [vmem:[#allocation3 + $0x88] sm:$0xf]
    %v496 = vld [vmem:[#allocation3 + $0x8c] sm:$0xf]
    %v497 = vld [vmem:[#allocation3 + $0x90] sm:$0xf]
    %v498 = vld [vmem:[#allocation3 + $0x94] sm:$0xf]
    %v499 = vld [vmem:[#allocation3 + $0x98] sm:$0xf]
    %v500 = vld [vmem:[#allocation3 + $0x9c] sm:$0xf]
    %v501 = vld [vmem:[#allocation3 + $0xa0] sm:$0xf]
    %v502 = vld [vmem:[#allocation3 + $0xa4] sm:$0xf]
    %v503 = vld [vmem:[#allocation3 + $0xa8] sm:$0xf]
    %v504 = vld [vmem:[#allocation3 + $0xac] sm:$0xf]
    %v505 = vld [vmem:[#allocation3 + $0xb0] sm:$0xf]
    %v506 = vld [vmem:[#allocation3 + $0xb4] sm:$0xf]
    %v507 = vld [vmem:[#allocation3 + $0xb8] sm:$0xf]
    %v508 = vld [vmem:[#allocation3 + $0xbc] sm:$0xf]
    %v509 = vld [vmem:[%s2 + $0x1] sm:$0x1]
    %v510 = vlaneseq
    %v511 = vshrl.u32 %v510, 7
    %v512 = vsub.s32 0, %v511
    %v513 = vrot.slane %v509, %v512
    %v530 = vunpack.c.l.b16 %v493
    %v531 = vunpack.c.l.b16 %v494
    %v532 = vunpack.c.l.b16 %v495
    %v533 = vunpack.c.l.b16 %v496
    %v534 = vunpack.c.l.b16 %v497
    %v535 = vunpack.c.l.b16 %v498
    %v536 = vunpack.c.l.b16 %v499
    %v537 = vunpack.c.l.b16 %v500
    %v538 = vunpack.c.l.b16 %v501
    %v539 = vunpack.c.l.b16 %v502
    %v540 = vunpack.c.l.b16 %v503
    %v541 = vunpack.c.l.b16 %v504
    %v542 = vunpack.c.l.b16 %v505
    %v543 = vunpack.c.l.b16 %v506
    %v544 = vunpack.c.l.b16 %v507
    %v545 = vunpack.c.l.b16 %v508
    %v546 = vpack.c.b16 %v531, %v530
    %v547 = vpack.c.b16 %v533, %v532
    %v548 = vpack.c.b16 %v535, %v534
    %v549 = vpack.c.b16 %v537, %v536
    %v550 = vpack.c.b16 %v539, %v538
    %v551 = vpack.c.b16 %v541, %v540
    %v552 = vpack.c.b16 %v543, %v542
    %v553 = vpack.c.b16 %v545, %v544
    %562 = vmatprep.subr.bf16.mxu0 0
    %563 = vmatpush1.bf16.msra.mxu0 %v546
    %564 = vmatprep.subr.bf16.mxu0 0
    %565 = vmatpush1.bf16.msra.mxu0 %v547
    %566 = vmatprep.subr.bf16.mxu0 0
    %567 = vmatpush1.bf16.msra.mxu0 %v548
    %568 = vmatprep.subr.bf16.mxu0 0
    %569 = vmatpush1.bf16.msra.mxu0 %v549
    %570 = vmatprep.subr.bf16.mxu0 0
    %571 = vmatpush1.bf16.msra.mxu0 %v550
    %572 = vmatprep.subr.bf16.mxu0 0
    %573 = vmatpush1.bf16.msra.mxu0 %v551
    %574 = vmatprep.subr.bf16.mxu0 0
    %575 = vmatpush1.bf16.msra.mxu0 %v552
    %576 = vmatprep.subr.bf16.mxu0 0
    %577 = vmatpush1.bf16.msra.mxu0 %v553
    %578 = vmatprep.subr.bf16.mxu0 0
    %579 = vmatpush1.bf16.msra.mxu0 0
    %580 = vmatprep.subr.bf16.mxu0 0
    %581 = vmatpush1.bf16.msra.mxu0 0
    %582 = vmatprep.subr.bf16.mxu0 0
    %583 = vmatpush1.bf16.msra.mxu0 0
    %584 = vmatprep.subr.bf16.mxu0 0
    %585 = vmatpush1.bf16.msra.mxu0 0
    %586 = vmatprep.subr.bf16.mxu0 0
    %587 = vmatpush1.bf16.msra.mxu0 0
    %588 = vmatprep.subr.bf16.mxu0 0
    %589 = vmatpush1.bf16.msra.mxu0 0
    %590 = vmatprep.subr.bf16.mxu0 0
    %591 = vmatpush1.bf16.msra.mxu0 0
    %592 = vmatprep.subr.bf16.mxu0 0
    %593 = vmatpush1.bf16.msra.mxu0 0
    %594 = vmatprep.mubr.bf16.mxu0 0
    %595 = vmatmul.mubr.bf16.gmra.mrb[0].mxu0 %v492
    %v596 = vpop.f32.mrb[0].mxu0
    %v597 = vadd.f32 %v513, %v596
    %v598 = vpop.f32.mrb[0].mxu0
    %v599 = vpop.f32.mrb[0].mxu0
    %v600 = vpop.f32.mrb[0].mxu0
    %601 = vdwg.mxu0
    %603 = vrot.lane.b32.xlu0 %v597, 72
    %v604 = vpop.permute.xlu0 %603
    %v606 = vsub.f32 %v32, %v604
    %v607 = vmul.f32 %v606, %v606
    %609 = vrot.lane.b32.xlu0 %v607, 56
    %v610 = vpop.permute.xlu0 %609
    %v612 = vsel %vm278, %v610, 0.0
    %613 = vadd.xlane.f32.xlu0 %v612
    %v614 = vpop.xlane.xlu0 %613
    %vm615 = vcmask 1041408
    %v616 = vsel %vm615, %v614, 0.0
    %v617 = vrot.slane %v616, 4
    %v618 = vadd.f32 %v616, %v617
    %v619 = vrot.slane %v618, 2
    %v620 = vadd.f32 %v618, %v619
    %v621 = vrot.slane %v620, 1
    %v622 = vadd.f32 %v620, %v621
    %v623 = vmul.f32 %v622, 0.0625
    %624 = vst [vmem:[%s4 + $0x2] sm:$0x3] %v623
    // Predicated region
    $region22: #{diff_sysid_forward.1} parent=1 // pred_check
      _
    $region23: #{diff_sysid_forward.1} parent=1 // pred_check_branch
      %626 = sbr.rel (0) target = $region25
    $region24: #{diff_sysid_forward.1} parent=1 // pred_region
      _
    $region25: #{diff_sysid_forward.1} parent=1 // pred_fallthru
      _
    // Predicated region
    $region26: #{diff_sysid_forward.1} parent=1 // pred_check
      _
    $region27: #{diff_sysid_forward.1} parent=1 // pred_check_branch
      %628 = sbr.rel (0) target = $region29
    $region28: #{diff_sysid_forward.1} parent=1 // pred_region
      _
    $region29: #{diff_sysid_forward.1} parent=1 // pred_fallthru
      _
    %629 = vsyncpa [#allocation4], 1

</llo_original>
